<compile_context>
chip_gen: v7x
topology: tpu7x:2x2x1
jax: 0.10.0
libtpu: 0.0.40
codegen_flags: <defaults>
</compile_context>

<pallas_src>
import jax
import jax.numpy as jnp
from jax.experimental import pallas as pl
from jax.experimental.pallas import tpu as pltpu


def _round_up(n: int, m: int) -> int:
    return ((n + m - 1) // m) * m


def s2s2_kernel(x_ref, w_ref, b_ref, o_ref, acc_ref):
    k = pl.program_id(1)

    @pl.when(k == 0)
    def _init():
        acc_ref[...] = jnp.zeros_like(acc_ref)

    # Partial product v^T += W_k @ x_k^T -> (6, TB); batch lives on the
    # 128-lane axis.  x is consumed at its native width (no upcast copy);
    # the MXU accumulates in f32.
    acc_ref[...] += jax.lax.dot_general(
        w_ref[...], x_ref[...],
        dimension_numbers=(((1,), (1,)), ((), ())),
        preferred_element_type=jnp.float32,
        precision=(jax.lax.Precision.HIGHEST
                   if x_ref.dtype == jnp.float32
                   else jax.lax.Precision.DEFAULT),
    )

    @pl.when(k == pl.num_programs(1) - 1)
    def _finalize():
        vt = acc_ref[...] + b_ref[...]          # (6, TB) f32
        v1 = vt[0:3, :]                         # (3, TB)
        v2 = vt[3:6, :]                         # (3, TB)

        # e1 = v1 / clamp(||v1||, 1e-5) == v1 * rsqrt(clamp(||v1||^2, 1e-10))
        inv1 = jax.lax.rsqrt(
            jnp.maximum(jnp.sum(v1 * v1, axis=0, keepdims=True), 1e-10))
        e1 = v1 * inv1

        # u2 = v2 - <e1, v2> e1 ; e2 = u2 / clamp(||u2||, 1e-5)
        proj = jnp.sum(e1 * v2, axis=0, keepdims=True)
        u2 = v2 - proj * e1
        inv2 = jax.lax.rsqrt(
            jnp.maximum(jnp.sum(u2 * u2, axis=0, keepdims=True), 1e-10))
        e2 = u2 * inv2

        # e3 = e1 x e2, written straight into the output rows (no concats).
        a0, a1, a2 = e1[0:1, :], e1[1:2, :], e1[2:3, :]
        c0, c1, c2 = e2[0:1, :], e2[1:2, :], e2[2:3, :]

        o_ref[0:3, :] = e1
        o_ref[3:6, :] = e2
        o_ref[6:7, :] = a1 * c2 - a2 * c1
        o_ref[7:8, :] = a2 * c0 - a0 * c2
        o_ref[8:9, :] = a0 * c1 - a1 * c0


def _vmem_budgets():
    """(vmem_limit_bytes, x_double_buffer_budget_bytes), generation-aware."""
    phys = None
    try:
        phys = getattr(pltpu.get_tpu_info(), "vmem_capacity_bytes", None)
    except Exception:  # off-device / API drift: fall back to conservative v7x
        phys = None
    if phys is None:
        phys = 64 * 1024 * 1024
    if phys >= 128 * 1024 * 1024:          # v5e / v6e: 128 MiB physical VMEM
        return 64 * 1024 * 1024, 40 * 1024 * 1024
    return 48 * 1024 * 1024, 18 * 1024 * 1024   # v7x: 64 MiB physical VMEM


def _pick_tiles(batch: int, d: int, x_itemsize: int, x_budget: int):
    """Choose (TB, TK).  TK always divides D exactly."""
    d_pad = _round_up(d, 128)

    # Batch tile: as large as possible to amortize the ~0.35 us/step overhead,
    # but leave >= 4 grid steps for megacore sharding once batch >= 4096
    # (neutral-to-free on single-TC chips), and a sanity ceiling of 8192.
    tb = min(8192,
             _round_up(batch, 128),
             max(1024, _round_up(pl.cdiv(batch, 4), 128)))
    tb = max(128, tb)

    def x_bytes(tb_, tk_pad):
        # Double-buffered x block with the lane-padded minor dim.
        return 2 * tb_ * tk_pad * x_itemsize

    if x_bytes(tb, d_pad) <= x_budget:
        return tb, d                           # single K step, full D

    # Over budget: try a K split that keeps TB large.  TK must be a multiple
    # of 128 that divides D exactly so no padded tail enters the contraction.
    if d % 128 == 0:
        units = d // 128
        for m in range(units, 0, -1):
            if units % m == 0 and x_bytes(tb, 128 * m) <= x_budget:
                return tb, 128 * m

    # Fallback (D large and not 128-divisible): shrink TB, keep full D.
    cap = (x_budget // (2 * d_pad * x_itemsize) // 128) * 128
    return max(128, min(tb, cap)), d


def s2s2_mean(x, weight, bias):
    """x: (B, D), weight: (6, D), bias: (6,) -> (B, 3, 3) float32."""
    B, D = x.shape

    # Feed x at its native width to the MXU; only exotic dtypes get upcast.
    if x.dtype == jnp.bfloat16 or x.dtype == jnp.float32:
        mm_dtype = x.dtype
    else:
        x = x.astype(jnp.float32)
        mm_dtype = jnp.float32
    w = weight.astype(mm_dtype)                  # tiny (6, D), one-time cast
    b = bias.reshape(6, 1).astype(jnp.float32)

    vmem_limit, x_budget = _vmem_budgets()
    itemsize = jnp.dtype(mm_dtype).itemsize
    TB, TK = _pick_tiles(B, D, itemsize, x_budget)
    nbt = pl.cdiv(B, TB)        # ragged last batch tile: Pallas masks it
    nkt = D // TK               # TK divides D by construction

    out9 = pl.pallas_call(
        s2s2_kernel,
        out_shape=jax.ShapeDtypeStruct((9, B), jnp.float32),
        grid=(nbt, nkt),
        in_specs=[
            pl.BlockSpec((TB, TK), lambda i, k: (i, k)),   # x: streamed
            pl.BlockSpec((6, TK), lambda i, k: (0, k)),    # weight: K-tiled
            pl.BlockSpec((6, 1), lambda i, k: (0, 0)),     # bias: resident
        ],
        out_specs=pl.BlockSpec((9, TB), lambda i, k: (0, i)),  # lane-dense
        scratch_shapes=[pltpu.VMEM((6, TB), jnp.float32)],     # v^T accum
        compiler_params=pltpu.CompilerParams(
            dimension_semantics=("parallel", "arbitrary"),
            vmem_limit_bytes=vmem_limit,
        ),
        cost_estimate=pl.CostEstimate(
            flops=2 * B * D * 6 + 50 * B,
            transcendentals=2 * B,
            bytes_accessed=B * D * itemsize + 6 * D * itemsize + 9 * B * 4,
        ),
    )(x, w, b)

    # (9, B) -> (B, 9) -> (B, 3, 3); rows are [e1, e2, e3].
    return out9.T.reshape(B, 3, 3)


def _reference(x, weight, bias):
    """Pure-JAX reference matching the PyTorch module (f32)."""
    v = jnp.dot(x.astype(jnp.float32), weight.astype(jnp.float32).T,
                precision=jax.lax.Precision.HIGHEST) + bias.astype(jnp.float32)
    v1, v2 = v[:, :3], v[:, 3:]
    n1 = jnp.maximum(jnp.linalg.norm(v1, axis=-1, keepdims=True), 1e-5)
    e1 = v1 / n1
    u2 = v2 - jnp.sum(e1 * v2, axis=-1, keepdims=True) * e1
    n2 = jnp.maximum(jnp.linalg.norm(u2, axis=-1, keepdims=True), 1e-5)
    e2 = u2 / n2
    e3 = jnp.cross(e1, e2)
    return jnp.stack([e1, e2, e3], axis=1)


if __name__ == "__main__":
    B, D = 8, 32  # batch, input_dims

    key = jax.random.PRNGKey(0)
    kx, kw, kb = jax.random.split(key, 3)

    x = jax.random.normal(kx, (B, D), dtype=jnp.float32)
    # Deterministic param init matching uniform_(-10, 10) in the module.
    weight = jax.random.uniform(kw, (6, D), minval=-10.0, maxval=10.0,
                                dtype=jnp.float32)
    bias = jax.random.uniform(kb, (6,), minval=-10.0, maxval=10.0,
                              dtype=jnp.float32)

    rot = s2s2_mean(x, weight, bias)
    rot = jax.block_until_ready(rot)

    assert rot.shape == (B, 3, 3)
    assert rot.dtype == jnp.float32

    ref = jax.block_until_ready(_reference(x, weight, bias))
    assert jnp.allclose(rot, ref, atol=1e-2, rtol=1e-2), (
        float(jnp.max(jnp.abs(rot - ref))))

    print("KERNEL_OK")
</pallas_src>

<mosaic_0001>
module attributes {stable_mosaic.version = 11 : i64} {
  func.func @s2s2_kernel(%arg0: i32, %arg1: i32, %arg2: memref<128x32xf32, #tpu.memory_space<vmem>>, %arg3: memref<6x32xf32, #tpu.memory_space<vmem>>, %arg4: memref<6x1xf32, #tpu.memory_space<vmem>>, %arg5: memref<9x128xf32, #tpu.memory_space<vmem>>, %arg6: memref<6x128xf32, #tpu.memory_space<vmem>>) attributes {dimension_semantics = [#tpu.dimension_semantics<parallel>, #tpu.dimension_semantics<arbitrary>], iteration_bounds = array<i64: 1, 1>, scalar_prefetch = 0 : i64, scratch_operands = 1 : i64, tpu.core_type = #tpu.core_type<tc>, window_params = [{transform_indices = @transform_0, window_bounds = array<i64: 128, 32>}, {transform_indices = @transform_1, window_bounds = array<i64: 6, 32>}, {pipeline_mode = #tpu.pipeline_mode<synchronous>, transform_indices = @transform_2, window_bounds = array<i64: 6, 1>}, {transform_indices = @transform_3, window_bounds = array<i64: 9, 128>}]} {
    %c0_i32 = arith.constant 0 : i32
    %0 = arith.cmpi eq, %arg1, %c0_i32 : i32
    %1 = arith.extui %0 : i1 to i32
    %c0_i32_0 = arith.constant 0 : i32
    %2 = arith.cmpi ne, %1, %c0_i32_0 : i32
    scf.if %2 {
      %cst_10 = arith.constant 0.000000e+00 : f32
      %12 = vector.broadcast %cst_10 : f32 to vector<6x128xf32>
      %c0_11 = arith.constant 0 : index
      %c0_12 = arith.constant 0 : index
      %13 = vector.load %arg6[%c0_11, %c0_12] : memref<6x128xf32, #tpu.memory_space<vmem>>, vector<6x128xf32>
      tpu.vector_store %arg6[%c0_11, %c0_12], %12 {strides = array<i32>} : memref<6x128xf32, #tpu.memory_space<vmem>>, vector<6x128xf32>,
    } else {
    }
    %c0 = arith.constant 0 : index
    %c0_1 = arith.constant 0 : index
    %3 = vector.load %arg6[%c0, %c0_1] : memref<6x128xf32, #tpu.memory_space<vmem>>, vector<6x128xf32>
    %c0_2 = arith.constant 0 : index
    %c0_3 = arith.constant 0 : index
    %4 = vector.load %arg3[%c0_2, %c0_3] : memref<6x32xf32, #tpu.memory_space<vmem>>, vector<6x32xf32>
    %c0_4 = arith.constant 0 : index
    %c0_5 = arith.constant 0 : index
    %5 = vector.load %arg2[%c0_4, %c0_5] : memref<128x32xf32, #tpu.memory_space<vmem>>, vector<128x32xf32>
    %cst = arith.constant dense<0.000000e+00> : vector<6x128xf32>
    %6 = tpu.matmul %4, %5, %cst {dimension_numbers = #tpu.dot_dimension_numbers<[1], [1], [0], [0], [0, 0, 1, 0], [], []>, precision = #tpu.contract_precision<fp32>} : vector<6x32xf32>, vector<128x32xf32>, vector<6x128xf32> -> vector<6x128xf32>
    %7 = arith.addf %3, %6 : vector<6x128xf32>
    %c0_6 = arith.constant 0 : index
    %c0_7 = arith.constant 0 : index
    %8 = vector.load %arg6[%c0_6, %c0_7] : memref<6x128xf32, #tpu.memory_space<vmem>>, vector<6x128xf32>
    tpu.vector_store %arg6[%c0_6, %c0_7], %7 {strides = array<i32>} : memref<6x128xf32, #tpu.memory_space<vmem>>, vector<6x128xf32>,
    %c0_i32_8 = arith.constant 0 : i32
    %9 = arith.cmpi eq, %arg1, %c0_i32_8 : i32
    %10 = arith.extui %9 : i1 to i32
    %c0_i32_9 = arith.constant 0 : i32
    %11 = arith.cmpi ne, %10, %c0_i32_9 : i32
    scf.if %11 {
      %c0_10 = arith.constant 0 : index
      %c0_11 = arith.constant 0 : index
      %12 = vector.load %arg6[%c0_10, %c0_11] : memref<6x128xf32, #tpu.memory_space<vmem>>, vector<6x128xf32>
      %c0_12 = arith.constant 0 : index
      %c0_13 = arith.constant 0 : index
      %13 = vector.load %arg4[%c0_12, %c0_13] : memref<6x1xf32, #tpu.memory_space<vmem>>, vector<6x1xf32>
      %14 = vector.broadcast %13 : vector<6x1xf32> to vector<6x128xf32>
      %15 = arith.addf %12, %14 : vector<6x128xf32>
      %16 = vector.extract_strided_slice %15 {offsets = [0, 0], sizes = [3, 128], strides = [1, 1]} : vector<6x128xf32> to vector<3x128xf32>
      %17 = vector.extract_strided_slice %15 {offsets = [3, 0], sizes = [3, 128], strides = [1, 1]} : vector<6x128xf32> to vector<3x128xf32>
      %18 = arith.mulf %16, %16 : vector<3x128xf32>
      %cst_14 = arith.constant dense<0.000000e+00> : vector<128xf32>
      %19 = vector.multi_reduction <add>, %18, %cst_14 [0] : vector<3x128xf32> to vector<128xf32>
      %20 = vector.shape_cast %19 : vector<128xf32> to vector<1x128xf32>
      %cst_15 = arith.constant 1.000000e-10 : f32
      %21 = vector.broadcast %cst_15 : f32 to vector<1x128xf32>
      %22 = arith.maximumf %20, %21 : vector<1x128xf32>
      %23 = math.rsqrt %22 : vector<1x128xf32>
      %24 = vector.broadcast %23 : vector<1x128xf32> to vector<3x128xf32>
      %25 = arith.mulf %16, %24 : vector<3x128xf32>
      %26 = arith.mulf %25, %17 : vector<3x128xf32>
      %cst_16 = arith.constant dense<0.000000e+00> : vector<128xf32>
      %27 = vector.multi_reduction <add>, %26, %cst_16 [0] : vector<3x128xf32> to vector<128xf32>
      %28 = vector.shape_cast %27 : vector<128xf32> to vector<1x128xf32>
      %29 = vector.broadcast %28 : vector<1x128xf32> to vector<3x128xf32>
      %30 = arith.mulf %29, %25 : vector<3x128xf32>
      %31 = arith.subf %17, %30 : vector<3x128xf32>
      %32 = arith.mulf %31, %31 : vector<3x128xf32>
      %cst_17 = arith.constant dense<0.000000e+00> : vector<128xf32>
      %33 = vector.multi_reduction <add>, %32, %cst_17 [0] : vector<3x128xf32> to vector<128xf32>
      %34 = vector.shape_cast %33 : vector<128xf32> to vector<1x128xf32>
      %cst_18 = arith.constant 1.000000e-10 : f32
      %35 = vector.broadcast %cst_18 : f32 to vector<1x128xf32>
      %36 = arith.maximumf %34, %35 : vector<1x128xf32>
      %37 = math.rsqrt %36 : vector<1x128xf32>
      %38 = vector.broadcast %37 : vector<1x128xf32> to vector<3x128xf32>
      %39 = arith.mulf %31, %38 : vector<3x128xf32>
      %40 = vector.extract_strided_slice %25 {offsets = [0, 0], sizes = [1, 128], strides = [1, 1]} : vector<3x128xf32> to vector<1x128xf32>
      %41 = vector.extract_strided_slice %25 {offsets = [1, 0], sizes = [1, 128], strides = [1, 1]} : vector<3x128xf32> to vector<1x128xf32>
      %42 = vector.extract_strided_slice %25 {offsets = [2, 0], sizes = [1, 128], strides = [1, 1]} : vector<3x128xf32> to vector<1x128xf32>
      %43 = vector.extract_strided_slice %39 {offsets = [0, 0], sizes = [1, 128], strides = [1, 1]} : vector<3x128xf32> to vector<1x128xf32>
      %44 = vector.extract_strided_slice %39 {offsets = [1, 0], sizes = [1, 128], strides = [1, 1]} : vector<3x128xf32> to vector<1x128xf32>
      %45 = vector.extract_strided_slice %39 {offsets = [2, 0], sizes = [1, 128], strides = [1, 1]} : vector<3x128xf32> to vector<1x128xf32>
      %c0_19 = arith.constant 0 : index
      %c0_20 = arith.constant 0 : index
      %46 = vector.load %arg5[%c0_19, %c0_20] : memref<9x128xf32, #tpu.memory_space<vmem>>, vector<3x128xf32>
      tpu.vector_store %arg5[%c0_19, %c0_20], %25 {strides = array<i32>} : memref<9x128xf32, #tpu.memory_space<vmem>>, vector<3x128xf32>,
      %c3 = arith.constant 3 : index
      %c0_21 = arith.constant 0 : index
      %47 = vector.load %arg5[%c3, %c0_21] : memref<9x128xf32, #tpu.memory_space<vmem>>, vector<3x128xf32>
      tpu.vector_store %arg5[%c3, %c0_21], %39 {strides = array<i32>} : memref<9x128xf32, #tpu.memory_space<vmem>>, vector<3x128xf32>,
      %48 = arith.mulf %41, %45 : vector<1x128xf32>
      %49 = arith.mulf %42, %44 : vector<1x128xf32>
      %50 = arith.subf %48, %49 : vector<1x128xf32>
      %c6 = arith.constant 6 : index
      %c0_22 = arith.constant 0 : index
      %51 = vector.load %arg5[%c6, %c0_22] : memref<9x128xf32, #tpu.memory_space<vmem>>, vector<1x128xf32>
      tpu.vector_store %arg5[%c6, %c0_22], %50 {strides = array<i32>} : memref<9x128xf32, #tpu.memory_space<vmem>>, vector<1x128xf32>,
      %52 = arith.mulf %42, %43 : vector<1x128xf32>
      %53 = arith.mulf %40, %45 : vector<1x128xf32>
      %54 = arith.subf %52, %53 : vector<1x128xf32>
      %c7 = arith.constant 7 : index
      %c0_23 = arith.constant 0 : index
      %55 = vector.load %arg5[%c7, %c0_23] : memref<9x128xf32, #tpu.memory_space<vmem>>, vector<1x128xf32>
      tpu.vector_store %arg5[%c7, %c0_23], %54 {strides = array<i32>} : memref<9x128xf32, #tpu.memory_space<vmem>>, vector<1x128xf32>,
      %56 = arith.mulf %40, %44 : vector<1x128xf32>
      %57 = arith.mulf %41, %43 : vector<1x128xf32>
      %58 = arith.subf %56, %57 : vector<1x128xf32>
      %c8 = arith.constant 8 : index
      %c0_24 = arith.constant 0 : index
      %59 = vector.load %arg5[%c8, %c0_24] : memref<9x128xf32, #tpu.memory_space<vmem>>, vector<1x128xf32>
      tpu.vector_store %arg5[%c8, %c0_24], %58 {strides = array<i32>} : memref<9x128xf32, #tpu.memory_space<vmem>>, vector<1x128xf32>,
    } else {
    }
    return
  }
  func.func @transform_0(%arg0: i32, %arg1: i32) -> (i32, i32) {
    %c0_i32 = arith.constant 0 : i32
    return %arg0, %arg1 : i32, i32
  }
  func.func @transform_1(%arg0: i32, %arg1: i32) -> (i32, i32) {
    %c0_i32 = arith.constant 0 : i32
    %c0_i32_0 = arith.constant 0 : i32
    return %c0_i32, %arg1 : i32, i32
  }
  func.func @transform_2(%arg0: i32, %arg1: i32) -> (i32, i32) {
    %c0_i32 = arith.constant 0 : i32
    %c0_i32_0 = arith.constant 0 : i32
    %c0_i32_1 = arith.constant 0 : i32
    return %c0_i32, %c0_i32_0 : i32, i32
  }
  func.func @transform_3(%arg0: i32, %arg1: i32) -> (i32, i32) {
    %c0_i32 = arith.constant 0 : i32
    %c0_i32_0 = arith.constant 0 : i32
    return %c0_i32, %arg0 : i32, i32
  }
}

</mosaic_0001>

<llo_original>
// kernel: tpu_custom_call.1
$region0: #{tpu_custom_call.1}
  #allocation0 [shape = 'u32[]', space=smem, size = 0x4, offset = 0x4, fixed_abs, tag = 'smem constant byte address 0x4 - core index']
  #allocation1 [shape = 'u32[144,128]{1,0:T(1,128)}', space=vmem, size = 0x12000, scoped, tag = 'internal scratch']
  #allocation2 [shape = 'f32[6,128]{1,0:T(8,128)}', space=vmem, size = 0x1000, scoped, tag = 'scratch operand']
  %s0 = inlined_call_operand.vmem [shape: f32[8,32], index: 0, kind: input, shape index: {}]
  %s1 = inlined_call_operand.hbm [shape: f32[6,32], index: 1, kind: input, shape index: {}]
  %s2 = inlined_call_operand.vmem [shape: f32[6,1], index: 2, kind: input, shape index: {}]
  %s3 = inlined_call_operand.vmem [shape: f32[9,8], index: 3, kind: output, shape index: {}]
  %s4 = sld [smem:[#allocation0]]
  $region34: #{tpu_custom_call.1} parent=0
    _
  %s6 = ssub.s32 1, %s4
  %s7 = scalar_select 0, %s6, %s4
  $region1: #{tpu_custom_call.1} parent=0
    #allocation3 [shape = 'u8[4096]{0}', space=vmem, size = 0x1000, scoped, tag = 'input window, operand 1, single buffered']
    #allocation4 [shape = 's32[1]{0}', space=sflag, size = 0x4, scoped, tag = 'scoped memory for tpu_custom_call.1']
    %8 = vsyncpa [#allocation4], 0
    // Predicated region
    $region2: #{tpu_custom_call.1} parent=1 // pred_check
      _
    $region3: #{tpu_custom_call.1} parent=1 // pred_check_branch
      %10 = sbr.rel (0) target = $region5
    $region4: #{tpu_custom_call.1} parent=1 // pred_region
      _
    $region5: #{tpu_custom_call.1} parent=1 // pred_fallthru
      _
    // Predicated region
    $region6: #{tpu_custom_call.1} parent=1 // pred_check
      _
    $region7: #{tpu_custom_call.1} parent=1 // pred_check_branch
      %12 = sbr.rel (0) target = $region9
    $region8: #{tpu_custom_call.1} parent=1 // pred_region
      %s14 = ssub.s32 128, 128
      %15 = vsyncadd [#allocation4], %s14
      %s17 = sshll.u32 [#allocation3], 4
      %s18 = int_to_ptr.vmem [resolvable:$true] %s17
      %20 = dma.hbm_to_vmem [thread:$0]  %s1, 128, %s18, [#allocation4]
    $region9: #{tpu_custom_call.1} parent=1 // pred_fallthru
      _
    // Predicated region
    $region10: #{tpu_custom_call.1} parent=1 // pred_check
      _
    $region11: #{tpu_custom_call.1} parent=1 // pred_check_branch
      %22 = sbr.rel (0) target = $region13
    $region12: #{tpu_custom_call.1} parent=1 // pred_region
      _
    $region13: #{tpu_custom_call.1} parent=1 // pred_fallthru
      _
    // Predicated region
    $region14: #{tpu_custom_call.1} parent=1 // pred_check
      _
    $region15: #{tpu_custom_call.1} parent=1 // pred_check_branch
      %24 = sbr.rel (0) target = $region17
    $region16: #{tpu_custom_call.1} parent=1 // pred_region
      %25 = dma.done [#allocation4], 128
    $region17: #{tpu_custom_call.1} parent=1 // pred_fallthru
      _
    %p26 = scmp.eq.s32.totalorder 0, 0
    // Predicated region
    $region18: #{tpu_custom_call.1} parent=1 // pred_check
      %p27 = pneg %p26
    $region19: #{tpu_custom_call.1} parent=1 // pred_check_branch
      %29 = sbr.rel (%p27) target = $region21
    $region20: #{tpu_custom_call.1} parent=1 // pred_region
      %30 = vst [vmem:[#allocation2] sm:$0x3f] 0.0
    $region21: #{tpu_custom_call.1} parent=1 // pred_fallthru
      _
    %v31 = vld [vmem:[#allocation2] sm:$0x3f]
    %v32 = vld [vmem:[#allocation3] sm:$0x3f]
    %v33 = vld [vmem:[%s0] sm:$0xff]
    %v34 = vld [vmem:[%s0 + $0x8] sm:$0xff]
    %v35 = vld [vmem:[%s0 + $0x10] sm:$0xff]
    %v36 = vld [vmem:[%s0 + $0x18] sm:$0xff]
    %v37 = vld [vmem:[%s0 + $0x20] sm:$0xff]
    %v38 = vld [vmem:[%s0 + $0x28] sm:$0xff]
    %v39 = vld [vmem:[%s0 + $0x30] sm:$0xff]
    %v40 = vld [vmem:[%s0 + $0x38] sm:$0xff]
    %v41 = vld [vmem:[%s0 + $0x40] sm:$0xff]
    %v42 = vld [vmem:[%s0 + $0x48] sm:$0xff]
    %v43 = vld [vmem:[%s0 + $0x50] sm:$0xff]
    %v44 = vld [vmem:[%s0 + $0x58] sm:$0xff]
    %v45 = vld [vmem:[%s0 + $0x60] sm:$0xff]
    %v46 = vld [vmem:[%s0 + $0x68] sm:$0xff]
    %v47 = vld [vmem:[%s0 + $0x70] sm:$0xff]
    %v48 = vld [vmem:[%s0 + $0x78] sm:$0xff]
    %vm49 = vcmask 261120
    %v51 = vsel %vm49, %v32, 0
    %v54 = vsel %vm49, %v33, 0
    %v57 = vsel %vm49, %v34, 0
    %v60 = vsel %vm49, %v35, 0
    %v63 = vsel %vm49, %v36, 0
    %v66 = vsel %vm49, %v37, 0
    %v69 = vsel %vm49, %v38, 0
    %v72 = vsel %vm49, %v39, 0
    %v75 = vsel %vm49, %v40, 0
    %v78 = vsel %vm49, %v41, 0
    %v81 = vsel %vm49, %v42, 0
    %v84 = vsel %vm49, %v43, 0
    %v87 = vsel %vm49, %v44, 0
    %v90 = vsel %vm49, %v45, 0
    %v93 = vsel %vm49, %v46, 0
    %v96 = vsel %vm49, %v47, 0
    %v99 = vsel %vm49, %v48, 0
    %101 = vmatprep.subr.mxu0 0.0
    %v102 = vand.u32 %v54, 4294901760
    %103 = vmatpush1.xpose.msra.mxu0 %v102
    %104 = vmatprep.subr.mxu0 0.0
    %v105 = vand.u32 %v57, 4294901760
    %106 = vmatpush1.xpose.msra.mxu0 %v105
    %107 = vmatprep.subr.mxu0 0.0
    %v108 = vand.u32 %v60, 4294901760
    %109 = vmatpush1.xpose.msra.mxu0 %v108
    %110 = vmatprep.subr.mxu0 0.0
    %v111 = vand.u32 %v63, 4294901760
    %112 = vmatpush1.xpose.msra.mxu0 %v111
    %113 = vmatprep.subr.mxu0 0.0
    %v114 = vand.u32 %v66, 4294901760
    %115 = vmatpush1.xpose.msra.mxu0 %v114
    %116 = vmatprep.subr.mxu0 0.0
    %v117 = vand.u32 %v69, 4294901760
    %118 = vmatpush1.xpose.msra.mxu0 %v117
    %119 = vmatprep.subr.mxu0 0.0
    %v120 = vand.u32 %v72, 4294901760
    %121 = vmatpush1.xpose.msra.mxu0 %v120
    %122 = vmatprep.subr.mxu0 0.0
    %v123 = vand.u32 %v75, 4294901760
    %124 = vmatpush1.xpose.msra.mxu0 %v123
    %125 = vmatprep.subr.mxu0 0.0
    %v126 = vand.u32 %v78, 4294901760
    %127 = vmatpush1.xpose.msra.mxu0 %v126
    %128 = vmatprep.subr.mxu0 0.0
    %v129 = vand.u32 %v81, 4294901760
    %130 = vmatpush1.xpose.msra.mxu0 %v129
    %131 = vmatprep.subr.mxu0 0.0
    %v132 = vand.u32 %v84, 4294901760
    %133 = vmatpush1.xpose.msra.mxu0 %v132
    %134 = vmatprep.subr.mxu0 0.0
    %v135 = vand.u32 %v87, 4294901760
    %136 = vmatpush1.xpose.msra.mxu0 %v135
    %137 = vmatprep.subr.mxu0 0.0
    %v138 = vand.u32 %v90, 4294901760
    %139 = vmatpush1.xpose.msra.mxu0 %v138
    %140 = vmatprep.subr.mxu0 0.0
    %v141 = vand.u32 %v93, 4294901760
    %142 = vmatpush1.xpose.msra.mxu0 %v141
    %143 = vmatprep.subr.mxu0 0.0
    %v144 = vand.u32 %v96, 4294901760
    %145 = vmatpush1.xpose.msra.mxu0 %v144
    %146 = vmatprep.subr.mxu0 0.0
    %v147 = vand.u32 %v99, 4294901760
    %148 = vmatpush1.xpose.msra.mxu0 %v147
    %149 = vmatprep.subr.mxu0 0.0
    %150 = vmatpush1.xpose.msra.mxu0 0.0
    %151 = vmatprep.subr.mxu0 0.0
    %152 = vmatpush1.xpose.msra.mxu0 0.0
    %153 = vmatprep.subr.mxu0 0.0
    %154 = vmatpush1.xpose.msra.mxu0 0.0
    %155 = vmatprep.subr.mxu0 0.0
    %156 = vmatpush1.xpose.msra.mxu0 0.0
    %157 = vmatprep.subr.mxu0 0.0
    %158 = vmatpush1.xpose.msra.mxu0 0.0
    %159 = vmatprep.subr.mxu0 0.0
    %160 = vmatpush1.xpose.msra.mxu0 0.0
    %161 = vmatprep.subr.mxu0 0.0
    %162 = vmatpush1.xpose.msra.mxu0 0.0
    %163 = vmatprep.subr.mxu0 0.0
    %164 = vmatpush1.xpose.msra.mxu0 0.0
    %165 = vmatprep.subr.mxu0 0.0
    %166 = vmatpush1.xpose.msra.mxu0 0.0
    %167 = vmatprep.subr.mxu0 0.0
    %168 = vmatpush1.xpose.msra.mxu0 0.0
    %169 = vmatprep.subr.mxu0 0.0
    %170 = vmatpush1.xpose.msra.mxu0 0.0
    %171 = vmatprep.subr.mxu0 0.0
    %172 = vmatpush1.xpose.msra.mxu0 0.0
    %173 = vmatprep.subr.mxu0 0.0
    %174 = vmatpush1.xpose.msra.mxu0 0.0
    %175 = vmatprep.subr.mxu0 0.0
    %176 = vmatpush1.xpose.msra.mxu0 0.0
    %177 = vmatprep.subr.mxu0 0.0
    %178 = vmatpush1.xpose.msra.mxu0 0.0
    %179 = vmatprep.subr.mxu0 0.0
    %180 = vmatpush1.xpose.msra.mxu0 0.0
    %181 = vmatprep.mubr.f32.mxu0 0.0
    %v182 = vand.u32 %v51, 4294901760
    %v183 = vsub.f32 %v51, %v182
    %v184 = vand.u32 %v183, 4294901760
    %v185 = vsub.f32 %v183, %v184
    %v186 = vand.u32 %v185, 4294901760
    %187 = vmatmul.mubr.f32.gmra.mrb[0].mxu0 %v186
    %v188 = vpop.f32.mrb[0].mxu0
    %v189 = vadd.f32 0.0, %v188
    %v190 = vpop.f32.mrb[0].mxu0
    %191 = vdwg.mxu0
    %192 = vmatprep.subr.mxu0 0.0
    %v193 = vand.u32 %v54, 4294901760
    %v194 = vsub.f32 %v54, %v193
    %v195 = vand.u32 %v194, 4294901760
    %v196 = vsub.f32 %v194, %v195
    %v197 = vand.u32 %v196, 4294901760
    %198 = vmatpush1.xpose.msra.mxu0 %v197
    %199 = vmatprep.subr.mxu0 0.0
    %v200 = vand.u32 %v57, 4294901760
    %v201 = vsub.f32 %v57, %v200
    %v202 = vand.u32 %v201, 4294901760
    %v203 = vsub.f32 %v201, %v202
    %v204 = vand.u32 %v203, 4294901760
    %205 = vmatpush1.xpose.msra.mxu0 %v204
    %206 = vmatprep.subr.mxu0 0.0
    %v207 = vand.u32 %v60, 4294901760
    %v208 = vsub.f32 %v60, %v207
    %v209 = vand.u32 %v208, 4294901760
    %v210 = vsub.f32 %v208, %v209
    %v211 = vand.u32 %v210, 4294901760
    %212 = vmatpush1.xpose.msra.mxu0 %v211
    %213 = vmatprep.subr.mxu0 0.0
    %v214 = vand.u32 %v63, 4294901760
    %v215 = vsub.f32 %v63, %v214
    %v216 = vand.u32 %v215, 4294901760
    %v217 = vsub.f32 %v215, %v216
    %v218 = vand.u32 %v217, 4294901760
    %219 = vmatpush1.xpose.msra.mxu0 %v218
    %220 = vmatprep.subr.mxu0 0.0
    %v221 = vand.u32 %v66, 4294901760
    %v222 = vsub.f32 %v66, %v221
    %v223 = vand.u32 %v222, 4294901760
    %v224 = vsub.f32 %v222, %v223
    %v225 = vand.u32 %v224, 4294901760
    %226 = vmatpush1.xpose.msra.mxu0 %v225
    %227 = vmatprep.subr.mxu0 0.0
    %v228 = vand.u32 %v69, 4294901760
    %v229 = vsub.f32 %v69, %v228
    %v230 = vand.u32 %v229, 4294901760
    %v231 = vsub.f32 %v229, %v230
    %v232 = vand.u32 %v231, 4294901760
    %233 = vmatpush1.xpose.msra.mxu0 %v232
    %234 = vmatprep.subr.mxu0 0.0
    %v235 = vand.u32 %v72, 4294901760
    %v236 = vsub.f32 %v72, %v235
    %v237 = vand.u32 %v236, 4294901760
    %v238 = vsub.f32 %v236, %v237
    %v239 = vand.u32 %v238, 4294901760
    %240 = vmatpush1.xpose.msra.mxu0 %v239
    %241 = vmatprep.subr.mxu0 0.0
    %v242 = vand.u32 %v75, 4294901760
    %v243 = vsub.f32 %v75, %v242
    %v244 = vand.u32 %v243, 4294901760
    %v245 = vsub.f32 %v243, %v244
    %v246 = vand.u32 %v245, 4294901760
    %247 = vmatpush1.xpose.msra.mxu0 %v246
    %248 = vmatprep.subr.mxu0 0.0
    %v249 = vand.u32 %v78, 4294901760
    %v250 = vsub.f32 %v78, %v249
    %v251 = vand.u32 %v250, 4294901760
    %v252 = vsub.f32 %v250, %v251
    %v253 = vand.u32 %v252, 4294901760
    %254 = vmatpush1.xpose.msra.mxu0 %v253
    %255 = vmatprep.subr.mxu0 0.0
    %v256 = vand.u32 %v81, 4294901760
    %v257 = vsub.f32 %v81, %v256
    %v258 = vand.u32 %v257, 4294901760
    %v259 = vsub.f32 %v257, %v258
    %v260 = vand.u32 %v259, 4294901760
    %261 = vmatpush1.xpose.msra.mxu0 %v260
    %262 = vmatprep.subr.mxu0 0.0
    %v263 = vand.u32 %v84, 4294901760
    %v264 = vsub.f32 %v84, %v263
    %v265 = vand.u32 %v264, 4294901760
    %v266 = vsub.f32 %v264, %v265
    %v267 = vand.u32 %v266, 4294901760
    %268 = vmatpush1.xpose.msra.mxu0 %v267
    %269 = vmatprep.subr.mxu0 0.0
    %v270 = vand.u32 %v87, 4294901760
    %v271 = vsub.f32 %v87, %v270
    %v272 = vand.u32 %v271, 4294901760
    %v273 = vsub.f32 %v271, %v272
    %v274 = vand.u32 %v273, 4294901760
    %275 = vmatpush1.xpose.msra.mxu0 %v274
    %276 = vmatprep.subr.mxu0 0.0
    %v277 = vand.u32 %v90, 4294901760
    %v278 = vsub.f32 %v90, %v277
    %v279 = vand.u32 %v278, 4294901760
    %v280 = vsub.f32 %v278, %v279
    %v281 = vand.u32 %v280, 4294901760
    %282 = vmatpush1.xpose.msra.mxu0 %v281
    %283 = vmatprep.subr.mxu0 0.0
    %v284 = vand.u32 %v93, 4294901760
    %v285 = vsub.f32 %v93, %v284
    %v286 = vand.u32 %v285, 4294901760
    %v287 = vsub.f32 %v285, %v286
    %v288 = vand.u32 %v287, 4294901760
    %289 = vmatpush1.xpose.msra.mxu0 %v288
    %290 = vmatprep.subr.mxu0 0.0
    %v291 = vand.u32 %v96, 4294901760
    %v292 = vsub.f32 %v96, %v291
    %v293 = vand.u32 %v292, 4294901760
    %v294 = vsub.f32 %v292, %v293
    %v295 = vand.u32 %v294, 4294901760
    %296 = vmatpush1.xpose.msra.mxu0 %v295
    %297 = vmatprep.subr.mxu0 0.0
    %v298 = vand.u32 %v99, 4294901760
    %v299 = vsub.f32 %v99, %v298
    %v300 = vand.u32 %v299, 4294901760
    %v301 = vsub.f32 %v299, %v300
    %v302 = vand.u32 %v301, 4294901760
    %303 = vmatpush1.xpose.msra.mxu0 %v302
    %304 = vmatprep.subr.mxu0 0.0
    %305 = vmatpush1.xpose.msra.mxu0 0.0
    %306 = vmatprep.subr.mxu0 0.0
    %307 = vmatpush1.xpose.msra.mxu0 0.0
    %308 = vmatprep.subr.mxu0 0.0
    %309 = vmatpush1.xpose.msra.mxu0 0.0
    %310 = vmatprep.subr.mxu0 0.0
    %311 = vmatpush1.xpose.msra.mxu0 0.0
    %312 = vmatprep.subr.mxu0 0.0
    %313 = vmatpush1.xpose.msra.mxu0 0.0
    %314 = vmatprep.subr.mxu0 0.0
    %315 = vmatpush1.xpose.msra.mxu0 0.0
    %316 = vmatprep.subr.mxu0 0.0
    %317 = vmatpush1.xpose.msra.mxu0 0.0
    %318 = vmatprep.subr.mxu0 0.0
    %319 = vmatpush1.xpose.msra.mxu0 0.0
    %320 = vmatprep.subr.mxu0 0.0
    %321 = vmatpush1.xpose.msra.mxu0 0.0
    %322 = vmatprep.subr.mxu0 0.0
    %323 = vmatpush1.xpose.msra.mxu0 0.0
    %324 = vmatprep.subr.mxu0 0.0
    %325 = vmatpush1.xpose.msra.mxu0 0.0
    %326 = vmatprep.subr.mxu0 0.0
    %327 = vmatpush1.xpose.msra.mxu0 0.0
    %328 = vmatprep.subr.mxu0 0.0
    %329 = vmatpush1.xpose.msra.mxu0 0.0
    %330 = vmatprep.subr.mxu0 0.0
    %331 = vmatpush1.xpose.msra.mxu0 0.0
    %332 = vmatprep.subr.mxu0 0.0
    %333 = vmatpush1.xpose.msra.mxu0 0.0
    %334 = vmatprep.subr.mxu0 0.0
    %335 = vmatpush1.xpose.msra.mxu0 0.0
    %336 = vmatprep.mubr.f32.mxu0 0.0
    %v337 = vand.u32 %v51, 4294901760
    %338 = vmatmul.mubr.f32.gmra.mrb[0].mxu0 %v337
    %v339 = vpop.f32.mrb[0].mxu0
    %v340 = vadd.f32 %v189, %v339
    %v341 = vpop.f32.mrb[0].mxu0
    %342 = vdwg.mxu0
    %343 = vmatprep.subr.mxu0 0.0
    %v344 = vand.u32 %v54, 4294901760
    %v345 = vsub.f32 %v54, %v344
    %346 = vmatpush1.xpose.msra.mxu0 %v345
    %347 = vmatprep.subr.mxu0 0.0
    %v348 = vand.u32 %v57, 4294901760
    %v349 = vsub.f32 %v57, %v348
    %350 = vmatpush1.xpose.msra.mxu0 %v349
    %351 = vmatprep.subr.mxu0 0.0
    %v352 = vand.u32 %v60, 4294901760
    %v353 = vsub.f32 %v60, %v352
    %354 = vmatpush1.xpose.msra.mxu0 %v353
    %355 = vmatprep.subr.mxu0 0.0
    %v356 = vand.u32 %v63, 4294901760
    %v357 = vsub.f32 %v63, %v356
    %358 = vmatpush1.xpose.msra.mxu0 %v357
    %359 = vmatprep.subr.mxu0 0.0
    %v360 = vand.u32 %v66, 4294901760
    %v361 = vsub.f32 %v66, %v360
    %362 = vmatpush1.xpose.msra.mxu0 %v361
    %363 = vmatprep.subr.mxu0 0.0
    %v364 = vand.u32 %v69, 4294901760
    %v365 = vsub.f32 %v69, %v364
    %366 = vmatpush1.xpose.msra.mxu0 %v365
    %367 = vmatprep.subr.mxu0 0.0
    %v368 = vand.u32 %v72, 4294901760
    %v369 = vsub.f32 %v72, %v368
    %370 = vmatpush1.xpose.msra.mxu0 %v369
    %371 = vmatprep.subr.mxu0 0.0
    %v372 = vand.u32 %v75, 4294901760
    %v373 = vsub.f32 %v75, %v372
    %374 = vmatpush1.xpose.msra.mxu0 %v373
    %375 = vmatprep.subr.mxu0 0.0
    %v376 = vand.u32 %v78, 4294901760
    %v377 = vsub.f32 %v78, %v376
    %378 = vmatpush1.xpose.msra.mxu0 %v377
    %379 = vmatprep.subr.mxu0 0.0
    %v380 = vand.u32 %v81, 4294901760
    %v381 = vsub.f32 %v81, %v380
    %382 = vmatpush1.xpose.msra.mxu0 %v381
    %383 = vmatprep.subr.mxu0 0.0
    %v384 = vand.u32 %v84, 4294901760
    %v385 = vsub.f32 %v84, %v384
    %386 = vmatpush1.xpose.msra.mxu0 %v385
    %387 = vmatprep.subr.mxu0 0.0
    %v388 = vand.u32 %v87, 4294901760
    %v389 = vsub.f32 %v87, %v388
    %390 = vmatpush1.xpose.msra.mxu0 %v389
    %391 = vmatprep.subr.mxu0 0.0
    %v392 = vand.u32 %v90, 4294901760
    %v393 = vsub.f32 %v90, %v392
    %394 = vmatpush1.xpose.msra.mxu0 %v393
    %395 = vmatprep.subr.mxu0 0.0
    %v396 = vand.u32 %v93, 4294901760
    %v397 = vsub.f32 %v93, %v396
    %398 = vmatpush1.xpose.msra.mxu0 %v397
    %399 = vmatprep.subr.mxu0 0.0
    %v400 = vand.u32 %v96, 4294901760
    %v401 = vsub.f32 %v96, %v400
    %402 = vmatpush1.xpose.msra.mxu0 %v401
    %403 = vmatprep.subr.mxu0 0.0
    %v404 = vand.u32 %v99, 4294901760
    %v405 = vsub.f32 %v99, %v404
    %406 = vmatpush1.xpose.msra.mxu0 %v405
    %407 = vmatprep.subr.mxu0 0.0
    %408 = vmatpush1.xpose.msra.mxu0 0.0
    %409 = vmatprep.subr.mxu0 0.0
    %410 = vmatpush1.xpose.msra.mxu0 0.0
    %411 = vmatprep.subr.mxu0 0.0
    %412 = vmatpush1.xpose.msra.mxu0 0.0
    %413 = vmatprep.subr.mxu0 0.0
    %414 = vmatpush1.xpose.msra.mxu0 0.0
    %415 = vmatprep.subr.mxu0 0.0
    %416 = vmatpush1.xpose.msra.mxu0 0.0
    %417 = vmatprep.subr.mxu0 0.0
    %418 = vmatpush1.xpose.msra.mxu0 0.0
    %419 = vmatprep.subr.mxu0 0.0
    %420 = vmatpush1.xpose.msra.mxu0 0.0
    %421 = vmatprep.subr.mxu0 0.0
    %422 = vmatpush1.xpose.msra.mxu0 0.0
    %423 = vmatprep.subr.mxu0 0.0
    %424 = vmatpush1.xpose.msra.mxu0 0.0
    %425 = vmatprep.subr.mxu0 0.0
    %426 = vmatpush1.xpose.msra.mxu0 0.0
    %427 = vmatprep.subr.mxu0 0.0
    %428 = vmatpush1.xpose.msra.mxu0 0.0
    %429 = vmatprep.subr.mxu0 0.0
    %430 = vmatpush1.xpose.msra.mxu0 0.0
    %431 = vmatprep.subr.mxu0 0.0
    %432 = vmatpush1.xpose.msra.mxu0 0.0
    %433 = vmatprep.subr.mxu0 0.0
    %434 = vmatpush1.xpose.msra.mxu0 0.0
    %435 = vmatprep.subr.mxu0 0.0
    %436 = vmatpush1.xpose.msra.mxu0 0.0
    %437 = vmatprep.subr.mxu0 0.0
    %438 = vmatpush1.xpose.msra.mxu0 0.0
    %439 = vmatprep.mubr.f32.mxu0 0.0
    %v440 = vand.u32 %v51, 4294901760
    %v441 = vsub.f32 %v51, %v440
    %442 = vmatmul.mubr.f32.gmra.mrb[0].mxu0 %v441
    %v443 = vpop.f32.mrb[0].mxu0
    %v444 = vadd.f32 %v340, %v443
    %v445 = vpop.f32.mrb[0].mxu0
    %446 = vdwg.mxu0
    %447 = vmatprep.subr.mxu0 0.0
    %v448 = vand.u32 %v54, 4294901760
    %449 = vmatpush1.xpose.msra.mxu0 %v448
    %450 = vmatprep.subr.mxu0 0.0
    %v451 = vand.u32 %v57, 4294901760
    %452 = vmatpush1.xpose.msra.mxu0 %v451
    %453 = vmatprep.subr.mxu0 0.0
    %v454 = vand.u32 %v60, 4294901760
    %455 = vmatpush1.xpose.msra.mxu0 %v454
    %456 = vmatprep.subr.mxu0 0.0
    %v457 = vand.u32 %v63, 4294901760
    %458 = vmatpush1.xpose.msra.mxu0 %v457
    %459 = vmatprep.subr.mxu0 0.0
    %v460 = vand.u32 %v66, 4294901760
    %461 = vmatpush1.xpose.msra.mxu0 %v460
    %462 = vmatprep.subr.mxu0 0.0
    %v463 = vand.u32 %v69, 4294901760
    %464 = vmatpush1.xpose.msra.mxu0 %v463
    %465 = vmatprep.subr.mxu0 0.0
    %v466 = vand.u32 %v72, 4294901760
    %467 = vmatpush1.xpose.msra.mxu0 %v466
    %468 = vmatprep.subr.mxu0 0.0
    %v469 = vand.u32 %v75, 4294901760
    %470 = vmatpush1.xpose.msra.mxu0 %v469
    %471 = vmatprep.subr.mxu0 0.0
    %v472 = vand.u32 %v78, 4294901760
    %473 = vmatpush1.xpose.msra.mxu0 %v472
    %474 = vmatprep.subr.mxu0 0.0
    %v475 = vand.u32 %v81, 4294901760
    %476 = vmatpush1.xpose.msra.mxu0 %v475
    %477 = vmatprep.subr.mxu0 0.0
    %v478 = vand.u32 %v84, 4294901760
    %479 = vmatpush1.xpose.msra.mxu0 %v478
    %480 = vmatprep.subr.mxu0 0.0
    %v481 = vand.u32 %v87, 4294901760
    %482 = vmatpush1.xpose.msra.mxu0 %v481
    %483 = vmatprep.subr.mxu0 0.0
    %v484 = vand.u32 %v90, 4294901760
    %485 = vmatpush1.xpose.msra.mxu0 %v484
    %486 = vmatprep.subr.mxu0 0.0
    %v487 = vand.u32 %v93, 4294901760
    %488 = vmatpush1.xpose.msra.mxu0 %v487
    %489 = vmatprep.subr.mxu0 0.0
    %v490 = vand.u32 %v96, 4294901760
    %491 = vmatpush1.xpose.msra.mxu0 %v490
    %492 = vmatprep.subr.mxu0 0.0
    %v493 = vand.u32 %v99, 4294901760
    %494 = vmatpush1.xpose.msra.mxu0 %v493
    %495 = vmatprep.subr.mxu0 0.0
    %496 = vmatpush1.xpose.msra.mxu0 0.0
    %497 = vmatprep.subr.mxu0 0.0
    %498 = vmatpush1.xpose.msra.mxu0 0.0
    %499 = vmatprep.subr.mxu0 0.0
    %500 = vmatpush1.xpose.msra.mxu0 0.0
    %501 = vmatprep.subr.mxu0 0.0
    %502 = vmatpush1.xpose.msra.mxu0 0.0
    %503 = vmatprep.subr.mxu0 0.0
    %504 = vmatpush1.xpose.msra.mxu0 0.0
    %505 = vmatprep.subr.mxu0 0.0
    %506 = vmatpush1.xpose.msra.mxu0 0.0
    %507 = vmatprep.subr.mxu0 0.0
    %508 = vmatpush1.xpose.msra.mxu0 0.0
    %509 = vmatprep.subr.mxu0 0.0
    %510 = vmatpush1.xpose.msra.mxu0 0.0
    %511 = vmatprep.subr.mxu0 0.0
    %512 = vmatpush1.xpose.msra.mxu0 0.0
    %513 = vmatprep.subr.mxu0 0.0
    %514 = vmatpush1.xpose.msra.mxu0 0.0
    %515 = vmatprep.subr.mxu0 0.0
    %516 = vmatpush1.xpose.msra.mxu0 0.0
    %517 = vmatprep.subr.mxu0 0.0
    %518 = vmatpush1.xpose.msra.mxu0 0.0
    %519 = vmatprep.subr.mxu0 0.0
    %520 = vmatpush1.xpose.msra.mxu0 0.0
    %521 = vmatprep.subr.mxu0 0.0
    %522 = vmatpush1.xpose.msra.mxu0 0.0
    %523 = vmatprep.subr.mxu0 0.0
    %524 = vmatpush1.xpose.msra.mxu0 0.0
    %525 = vmatprep.subr.mxu0 0.0
    %526 = vmatpush1.xpose.msra.mxu0 0.0
    %527 = vmatprep.mubr.f32.mxu0 0.0
    %v528 = vand.u32 %v51, 4294901760
    %v529 = vsub.f32 %v51, %v528
    %v530 = vand.u32 %v529, 4294901760
    %531 = vmatmul.mubr.f32.gmra.mrb[0].mxu0 %v530
    %v532 = vpop.f32.mrb[0].mxu0
    %v533 = vadd.f32 %v444, %v532
    %v534 = vpop.f32.mrb[0].mxu0
    %535 = vdwg.mxu0
    %536 = vmatprep.subr.mxu0 0.0
    %v537 = vand.u32 %v54, 4294901760
    %v538 = vsub.f32 %v54, %v537
    %v539 = vand.u32 %v538, 4294901760
    %540 = vmatpush1.xpose.msra.mxu0 %v539
    %541 = vmatprep.subr.mxu0 0.0
    %v542 = vand.u32 %v57, 4294901760
    %v543 = vsub.f32 %v57, %v542
    %v544 = vand.u32 %v543, 4294901760
    %545 = vmatpush1.xpose.msra.mxu0 %v544
    %546 = vmatprep.subr.mxu0 0.0
    %v547 = vand.u32 %v60, 4294901760
    %v548 = vsub.f32 %v60, %v547
    %v549 = vand.u32 %v548, 4294901760
    %550 = vmatpush1.xpose.msra.mxu0 %v549
    %551 = vmatprep.subr.mxu0 0.0
    %v552 = vand.u32 %v63, 4294901760
    %v553 = vsub.f32 %v63, %v552
    %v554 = vand.u32 %v553, 4294901760
    %555 = vmatpush1.xpose.msra.mxu0 %v554
    %556 = vmatprep.subr.mxu0 0.0
    %v557 = vand.u32 %v66, 4294901760
    %v558 = vsub.f32 %v66, %v557
    %v559 = vand.u32 %v558, 4294901760
    %560 = vmatpush1.xpose.msra.mxu0 %v559
    %561 = vmatprep.subr.mxu0 0.0
    %v562 = vand.u32 %v69, 4294901760
    %v563 = vsub.f32 %v69, %v562
    %v564 = vand.u32 %v563, 4294901760
    %565 = vmatpush1.xpose.msra.mxu0 %v564
    %566 = vmatprep.subr.mxu0 0.0
    %v567 = vand.u32 %v72, 4294901760
    %v568 = vsub.f32 %v72, %v567
    %v569 = vand.u32 %v568, 4294901760
    %570 = vmatpush1.xpose.msra.mxu0 %v569
    %571 = vmatprep.subr.mxu0 0.0
    %v572 = vand.u32 %v75, 4294901760
    %v573 = vsub.f32 %v75, %v572
    %v574 = vand.u32 %v573, 4294901760
    %575 = vmatpush1.xpose.msra.mxu0 %v574
    %576 = vmatprep.subr.mxu0 0.0
    %v577 = vand.u32 %v78, 4294901760
    %v578 = vsub.f32 %v78, %v577
    %v579 = vand.u32 %v578, 4294901760
    %580 = vmatpush1.xpose.msra.mxu0 %v579
    %581 = vmatprep.subr.mxu0 0.0
    %v582 = vand.u32 %v81, 4294901760
    %v583 = vsub.f32 %v81, %v582
    %v584 = vand.u32 %v583, 4294901760
    %585 = vmatpush1.xpose.msra.mxu0 %v584
    %586 = vmatprep.subr.mxu0 0.0
    %v587 = vand.u32 %v84, 4294901760
    %v588 = vsub.f32 %v84, %v587
    %v589 = vand.u32 %v588, 4294901760
    %590 = vmatpush1.xpose.msra.mxu0 %v589
    %591 = vmatprep.subr.mxu0 0.0
    %v592 = vand.u32 %v87, 4294901760
    %v593 = vsub.f32 %v87, %v592
    %v594 = vand.u32 %v593, 4294901760
    %595 = vmatpush1.xpose.msra.mxu0 %v594
    %596 = vmatprep.subr.mxu0 0.0
    %v597 = vand.u32 %v90, 4294901760
    %v598 = vsub.f32 %v90, %v597
    %v599 = vand.u32 %v598, 4294901760
    %600 = vmatpush1.xpose.msra.mxu0 %v599
    %601 = vmatprep.subr.mxu0 0.0
    %v602 = vand.u32 %v93, 4294901760
    %v603 = vsub.f32 %v93, %v602
    %v604 = vand.u32 %v603, 4294901760
    %605 = vmatpush1.xpose.msra.mxu0 %v604
    %606 = vmatprep.subr.mxu0 0.0
    %v607 = vand.u32 %v96, 4294901760
    %v608 = vsub.f32 %v96, %v607
    %v609 = vand.u32 %v608, 4294901760
    %610 = vmatpush1.xpose.msra.mxu0 %v609
    %611 = vmatprep.subr.mxu0 0.0
    %v612 = vand.u32 %v99, 4294901760
    %v613 = vsub.f32 %v99, %v612
    %v614 = vand.u32 %v613, 4294901760
    %615 = vmatpush1.xpose.msra.mxu0 %v614
    %616 = vmatprep.subr.mxu0 0.0
    %617 = vmatpush1.xpose.msra.mxu0 0.0
    %618 = vmatprep.subr.mxu0 0.0
    %619 = vmatpush1.xpose.msra.mxu0 0.0
    %620 = vmatprep.subr.mxu0 0.0
    %621 = vmatpush1.xpose.msra.mxu0 0.0
    %622 = vmatprep.subr.mxu0 0.0
    %623 = vmatpush1.xpose.msra.mxu0 0.0
    %624 = vmatprep.subr.mxu0 0.0
    %625 = vmatpush1.xpose.msra.mxu0 0.0
    %626 = vmatprep.subr.mxu0 0.0
    %627 = vmatpush1.xpose.msra.mxu0 0.0
    %628 = vmatprep.subr.mxu0 0.0
    %629 = vmatpush1.xpose.msra.mxu0 0.0
    %630 = vmatprep.subr.mxu0 0.0
    %631 = vmatpush1.xpose.msra.mxu0 0.0
    %632 = vmatprep.subr.mxu0 0.0
    %633 = vmatpush1.xpose.msra.mxu0 0.0
    %634 = vmatprep.subr.mxu0 0.0
    %635 = vmatpush1.xpose.msra.mxu0 0.0
    %636 = vmatprep.subr.mxu0 0.0
    %637 = vmatpush1.xpose.msra.mxu0 0.0
    %638 = vmatprep.subr.mxu0 0.0
    %639 = vmatpush1.xpose.msra.mxu0 0.0
    %640 = vmatprep.subr.mxu0 0.0
    %641 = vmatpush1.xpose.msra.mxu0 0.0
    %642 = vmatprep.subr.mxu0 0.0
    %643 = vmatpush1.xpose.msra.mxu0 0.0
    %644 = vmatprep.subr.mxu0 0.0
    %645 = vmatpush1.xpose.msra.mxu0 0.0
    %646 = vmatprep.subr.mxu0 0.0
    %647 = vmatpush1.xpose.msra.mxu0 0.0
    %648 = vmatprep.mubr.f32.mxu0 0.0
    %v649 = vand.u32 %v51, 4294901760
    %650 = vmatmul.mubr.f32.gmra.mrb[0].mxu0 %v649
    %v651 = vpop.f32.mrb[0].mxu0
    %v652 = vadd.f32 %v533, %v651
    %v653 = vpop.f32.mrb[0].mxu0
    %654 = vdwg.mxu0
    %655 = vmatprep.subr.mxu0 0.0
    %v656 = vand.u32 %v54, 4294901760
    %657 = vmatpush1.xpose.msra.mxu0 %v656
    %658 = vmatprep.subr.mxu0 0.0
    %v659 = vand.u32 %v57, 4294901760
    %660 = vmatpush1.xpose.msra.mxu0 %v659
    %661 = vmatprep.subr.mxu0 0.0
    %v662 = vand.u32 %v60, 4294901760
    %663 = vmatpush1.xpose.msra.mxu0 %v662
    %664 = vmatprep.subr.mxu0 0.0
    %v665 = vand.u32 %v63, 4294901760
    %666 = vmatpush1.xpose.msra.mxu0 %v665
    %667 = vmatprep.subr.mxu0 0.0
    %v668 = vand.u32 %v66, 4294901760
    %669 = vmatpush1.xpose.msra.mxu0 %v668
    %670 = vmatprep.subr.mxu0 0.0
    %v671 = vand.u32 %v69, 4294901760
    %672 = vmatpush1.xpose.msra.mxu0 %v671
    %673 = vmatprep.subr.mxu0 0.0
    %v674 = vand.u32 %v72, 4294901760
    %675 = vmatpush1.xpose.msra.mxu0 %v674
    %676 = vmatprep.subr.mxu0 0.0
    %v677 = vand.u32 %v75, 4294901760
    %678 = vmatpush1.xpose.msra.mxu0 %v677
    %679 = vmatprep.subr.mxu0 0.0
    %v680 = vand.u32 %v78, 4294901760
    %681 = vmatpush1.xpose.msra.mxu0 %v680
    %682 = vmatprep.subr.mxu0 0.0
    %v683 = vand.u32 %v81, 4294901760
    %684 = vmatpush1.xpose.msra.mxu0 %v683
    %685 = vmatprep.subr.mxu0 0.0
    %v686 = vand.u32 %v84, 4294901760
    %687 = vmatpush1.xpose.msra.mxu0 %v686
    %688 = vmatprep.subr.mxu0 0.0
    %v689 = vand.u32 %v87, 4294901760
    %690 = vmatpush1.xpose.msra.mxu0 %v689
    %691 = vmatprep.subr.mxu0 0.0
    %v692 = vand.u32 %v90, 4294901760
    %693 = vmatpush1.xpose.msra.mxu0 %v692
    %694 = vmatprep.subr.mxu0 0.0
    %v695 = vand.u32 %v93, 4294901760
    %696 = vmatpush1.xpose.msra.mxu0 %v695
    %697 = vmatprep.subr.mxu0 0.0
    %v698 = vand.u32 %v96, 4294901760
    %699 = vmatpush1.xpose.msra.mxu0 %v698
    %700 = vmatprep.subr.mxu0 0.0
    %v701 = vand.u32 %v99, 4294901760
    %702 = vmatpush1.xpose.msra.mxu0 %v701
    %703 = vmatprep.subr.mxu0 0.0
    %704 = vmatpush1.xpose.msra.mxu0 0.0
    %705 = vmatprep.subr.mxu0 0.0
    %706 = vmatpush1.xpose.msra.mxu0 0.0
    %707 = vmatprep.subr.mxu0 0.0
    %708 = vmatpush1.xpose.msra.mxu0 0.0
    %709 = vmatprep.subr.mxu0 0.0
    %710 = vmatpush1.xpose.msra.mxu0 0.0
    %711 = vmatprep.subr.mxu0 0.0
    %712 = vmatpush1.xpose.msra.mxu0 0.0
    %713 = vmatprep.subr.mxu0 0.0
    %714 = vmatpush1.xpose.msra.mxu0 0.0
    %715 = vmatprep.subr.mxu0 0.0
    %716 = vmatpush1.xpose.msra.mxu0 0.0
    %717 = vmatprep.subr.mxu0 0.0
    %718 = vmatpush1.xpose.msra.mxu0 0.0
    %719 = vmatprep.subr.mxu0 0.0
    %720 = vmatpush1.xpose.msra.mxu0 0.0
    %721 = vmatprep.subr.mxu0 0.0
    %722 = vmatpush1.xpose.msra.mxu0 0.0
    %723 = vmatprep.subr.mxu0 0.0
    %724 = vmatpush1.xpose.msra.mxu0 0.0
    %725 = vmatprep.subr.mxu0 0.0
    %726 = vmatpush1.xpose.msra.mxu0 0.0
    %727 = vmatprep.subr.mxu0 0.0
    %728 = vmatpush1.xpose.msra.mxu0 0.0
    %729 = vmatprep.subr.mxu0 0.0
    %730 = vmatpush1.xpose.msra.mxu0 0.0
    %731 = vmatprep.subr.mxu0 0.0
    %732 = vmatpush1.xpose.msra.mxu0 0.0
    %733 = vmatprep.subr.mxu0 0.0
    %734 = vmatpush1.xpose.msra.mxu0 0.0
    %735 = vmatprep.mubr.f32.mxu0 0.0
    %v736 = vand.u32 %v51, 4294901760
    %737 = vmatmul.mubr.f32.gmra.mrb[0].mxu0 %v736
    %v738 = vpop.f32.mrb[0].mxu0
    %v739 = vadd.f32 %v652, %v738
    %v740 = vpop.f32.mrb[0].mxu0
    %741 = vdwg.mxu0
    %v742 = vadd.f32 %v31, %v739
    %743 = vst [vmem:[#allocation2] sm:$0x3f] %v742
    // Predicated region
    $region22: #{tpu_custom_call.1} parent=1 // pred_check
      %p744 = pneg %p26
    $region23: #{tpu_custom_call.1} parent=1 // pred_check_branch
      %746 = sbr.rel (%p744) target = $region25
    $region24: #{tpu_custom_call.1} parent=1 // pred_region
      %v747 = vld [vmem:[#allocation2] sm:$0x3f]
      %v748 = vld [vmem:[%s2] sm:$0x3f]
      %750 = vset.pattern.permute.xlu0 0
      %751 = vperm.xlu0 %750, %v748
      %v752 = vpop.permute.xlu0 %751
      %v754 = vadd.f32 %v747, %v752
      %v755 = vmul.f32 %v754, %v754
      %vm756 = vcmask 1042432
      %v757 = vsel %vm756, %v755, 0.0
      %v758 = vrot.slane %v757, 4
      %v759 = vadd.f32 %v757, %v758
      %v760 = vrot.slane %v759, 2
      %v761 = vadd.f32 %v759, %v760
      %v762 = vrot.slane %v761, 1
      %v763 = vadd.f32 %v761, %v762
      %v764 = vmax.f32 %v763, 1e-10
      %v765 = vrsqrt.pop %v764
      %v766 = vmul.f32 %v754, %v765
      %v768 = vrot.slane %v754, 3
      %v770 = vmul.f32 %v766, %v768
      %v771 = vsel %vm756, %v770, 0.0
      %v772 = vrot.slane %v771, 4
      %v773 = vadd.f32 %v771, %v772
      %v774 = vrot.slane %v773, 2
      %v775 = vadd.f32 %v773, %v774
      %v776 = vrot.slane %v775, 1
      %v777 = vadd.f32 %v775, %v776
      %v778 = vmul.f32 %v777, %v766
      %v780 = vrot.slane %v778, 5
      %v782 = vsub.f32 %v754, %v780
      %v783 = vmul.f32 %v782, %v782
      %v785 = vrot.slane %v783, 3
      %v787 = vsel %vm756, %v785, 0.0
      %v788 = vrot.slane %v787, 4
      %v789 = vadd.f32 %v787, %v788
      %v790 = vrot.slane %v789, 2
      %v791 = vadd.f32 %v789, %v790
      %v792 = vrot.slane %v791, 1
      %v793 = vadd.f32 %v791, %v792
      %v794 = vmax.f32 %v793, 1e-10
      %v795 = vrsqrt.pop %v794
      %v796 = vmul.f32 %v782, %v795
      %797 = vst [vmem:[%s3] sm:$0x7] %v766
      %798 = vst [vmem:[%s3] sm:$0x38] %v796
      %v800 = vrot.slane %v796, 4
      %v802 = vmul.f32 %v766, %v800
      %v803 = vrot.slane %v796, 2
      %v805 = vmul.f32 %v766, %v803
      %v807 = vrot.slane %v805, 1
      %v809 = vsub.f32 %v802, %v807
      %810 = vst [vmem:[%s3 + $0x5] sm:$0x2] %v809
      %v811 = vrot.slane %v796, 1
      %v813 = vmul.f32 %v766, %v811
      %v814 = vrot.slane %v796, 5
      %v816 = vmul.f32 %v766, %v814
      %v818 = vrot.slane %v816, 6
      %v820 = vsub.f32 %v813, %v818
      %821 = vst [vmem:[%s3 + $0x5] sm:$0x4] %v820
      %822 = vst [vmem:[%s3 + $0x8] sm:$0x1] %v809
    $region25: #{tpu_custom_call.1} parent=1 // pred_fallthru
      _
    // Predicated region
    $region26: #{tpu_custom_call.1} parent=1 // pred_check
      _
    $region27: #{tpu_custom_call.1} parent=1 // pred_check_branch
      %824 = sbr.rel (0) target = $region29
    $region28: #{tpu_custom_call.1} parent=1 // pred_region
      _
    $region29: #{tpu_custom_call.1} parent=1 // pred_fallthru
      _
    // Predicated region
    $region30: #{tpu_custom_call.1} parent=1 // pred_check
      _
    $region31: #{tpu_custom_call.1} parent=1 // pred_check_branch
      %826 = sbr.rel (0) target = $region33
    $region32: #{tpu_custom_call.1} parent=1 // pred_region
      _
    $region33: #{tpu_custom_call.1} parent=1 // pred_fallthru
      _
    %827 = vsyncpa [#allocation4], 1

</llo_original>
